<compile_context>
chip_gen: v6e
topology: v6e:2x2x1
jax: 0.10.0
libtpu: 0.0.40
codegen_flags: <defaults>
</compile_context>

<pallas_src>
import functools

import jax
import jax.numpy as jnp
from jax.experimental import pallas as pl
from jax.experimental.pallas import tpu as pltpu

B = 8            # batch (sublane-aligned)
D = 123          # true knowledge / feature dim (nn.Linear(123, 123))
DP = 128         # lane-padded feature dim

mapping = {
    0: "add",
    1: "mul",
    2: "concat",
    3: "ffn",
    4: "sigmoid",
    5: "tanh",
    6: "identity",
    7: "neg",
}


# --------------------------- fused Pallas kernel -----------------------------

def _node_kernel(x1_ref, x2_ref, op_ref,            # SMEM scalar prefetch
                 a_ref, b_ref, w_hbm, bias_hbm,     # inputs
                 o_ref, o2_ref,                     # outputs
                 w_vmem, bias_vmem, sem):           # scratch
    """One grid step = one NAS node.

    x1/x2/op_ref : SMEM (N,) int32 — per-node descriptors (scalar prefetch)
    a_ref        : VMEM (1, B, DP) — candidate_inputs[x1[i]] (lane-padded)
    b_ref        : VMEM (1, B, DP) — candidate_inputs[x2[i]]
    w_hbm        : HBM  (DP, DP) bf16 — ffn weight, pre-transposed, zero-padded
    bias_hbm     : HBM  (8, DP)  f32  — ffn bias in row 0, zero-padded
    o_ref        : VMEM (1, B, DP) — primary output (all ops)
    o2_ref       : VMEM (1, B, DP) — second half; ONLY written by concat
                                     (garbage otherwise — wrapper never reads it)
    w_vmem/bias_vmem/sem : scratch used only by the op==3 branch.
    """
    i = pl.program_id(0)
    op = op_ref[i]
    a = a_ref[0]
    b = b_ref[0]

    @pl.when(op == 0)   # add
    def _():
        o_ref[0] = a + b

    @pl.when(op == 1)   # mul
    def _():
        o_ref[0] = a * b

    @pl.when(op == 2)   # concat: two lane-aligned halves, no cross-lane moves
    def _():
        o_ref[0] = a
        o2_ref[0] = b

    @pl.when(op == 3)   # ffn: y = x @ W^T + bias — weight DMA'd only here
    def _():
        cp_w = pltpu.make_async_copy(w_hbm, w_vmem, sem.at[0])
        cp_b = pltpu.make_async_copy(bias_hbm, bias_vmem, sem.at[1])
        cp_w.start()
        cp_b.start()
        cp_w.wait()
        cp_b.wait()
        # bf16 MXU matmul, f32 accumulate.  LHS is only 8 rows — if several
        # ffn nodes exist, packing their activations into one taller LHS would
        # raise MXU utilization further (not needed at this problem size).
        o_ref[0] = (
            jnp.dot(a.astype(jnp.bfloat16), w_vmem[...],
                    preferred_element_type=jnp.float32)
            + bias_vmem[0:1, :]
        )

    @pl.when(op == 4)   # sigmoid
    def _():
        o_ref[0] = jax.nn.sigmoid(a)

    @pl.when(op == 5)   # tanh
    def _():
        o_ref[0] = jnp.tanh(a)

    @pl.when(op == 6)   # identity
    def _():
        o_ref[0] = a

    @pl.when(op == 7)   # neg
    def _():
        o_ref[0] = -a


@functools.lru_cache(maxsize=None)
def _build_fused_cell(num_nodes, batch):
    """Build (once per (num_nodes, batch)) the jitted fused-cell pallas_call."""
    grid_spec = pltpu.PrefetchScalarGridSpec(
        num_scalar_prefetch=3,          # x1, x2, op arrays -> SMEM
        grid=(num_nodes,),
        in_specs=[
            # candidate gather via the prefetched indices (P2 pattern)
            pl.BlockSpec((1, batch, DP), lambda i, x1, x2, op: (x1[i], 0, 0)),
            pl.BlockSpec((1, batch, DP), lambda i, x1, x2, op: (x2[i], 0, 0)),
            # ffn params stay in HBM; DMA'd in-kernel only when op == 3
            pl.BlockSpec(memory_space=pl.ANY),
            pl.BlockSpec(memory_space=pl.ANY),
        ],
        out_specs=[
            pl.BlockSpec((1, batch, DP), lambda i, x1, x2, op: (i, 0, 0)),
            pl.BlockSpec((1, batch, DP), lambda i, x1, x2, op: (i, 0, 0)),
        ],
        scratch_shapes=[
            pltpu.VMEM((DP, DP), jnp.bfloat16),   # ffn weight landing buffer
            pltpu.VMEM((8, DP), jnp.float32),     # ffn bias landing buffer
            pltpu.SemaphoreType.DMA((2,)),
        ],
    )
    call = pl.pallas_call(
        _node_kernel,
        out_shape=(
            jax.ShapeDtypeStruct((num_nodes, batch, DP), jnp.float32),
            jax.ShapeDtypeStruct((num_nodes, batch, DP), jnp.float32),
        ),
        grid_spec=grid_spec,
        compiler_params=pltpu.CompilerParams(
            # node axis is order-independent -> shard across TCs on v7x
            dimension_semantics=("parallel",)),
    )
    return jax.jit(call)


# --------------------------- padding helpers ---------------------------------

def _pad_lanes(x, target=DP):
    """Zero-pad the last (lane) dim of a 2-D array to `target`."""
    pad = target - x.shape[-1]
    if pad == 0:
        return x
    return jnp.pad(x, ((0, 0), (0, pad)))


# --------------------------- parameter init ----------------------------------

def init_node_params(key):
    k_ffn_w, k_ffn_b, k_ls1, k_ls2, k_same = jax.random.split(key, 5)
    ffn_w_t = 0.02 * jax.random.normal(k_ffn_w, (D, D), jnp.float32)  # (in,out)
    ffn_b = 0.02 * jax.random.normal(k_ffn_b, (1, D), jnp.float32)
    ffn_w_t_pad = jnp.pad(ffn_w_t, ((0, DP - D), (0, DP - D)))
    bias_pad = jnp.zeros((8, DP), jnp.float32).at[0, :D].set(ffn_b[0])
    params = {
        # exact-shape weights of the 'ffn' primitive (Linear D -> D), transposed
        "ffn_w_t": ffn_w_t,
        "ffn_b": ffn_b,
        # kernel-side copies: lane/sublane padded; weight in bf16 (MXU-native,
        # halves the weight DMA), bias row-0 of an (8, DP) f32 slab.
        "ffn_w_t_pad_bf16": ffn_w_t_pad.astype(jnp.bfloat16),
        "ffn_b_pad": bias_pad,
        # self.linear_single / self.linear_same exist in the reference __init__
        # but are never used in forward; initialized for shape fidelity only.
        "linear_single_w1": 0.02 * jax.random.normal(k_ls1, (10, 1), jnp.float32),
        "linear_single_b1": jnp.zeros((10,), jnp.float32),
        "linear_single_w2": 0.02 * jax.random.normal(k_ls2, (1, 10), jnp.float32),
        "linear_single_b2": jnp.zeros((1,), jnp.float32),
        "linear_same_w": 0.02 * jax.random.normal(k_same, (123, 123), jnp.float32),
        "linear_same_b": jnp.zeros((123,), jnp.float32),
    }
    return params


# --------------------------- cell / node forward ------------------------------

def nas_cell_forward(params, candidate_inputs, nas_nodes):
    """Evaluate a whole NAS cell (list of (x1, x2, op) nodes) in ONE pallas_call.

    candidate_inputs: list of exact-shape (B, D) arrays.
    Returns a list of per-node outputs with the exact reference shapes:
    (B, D) for unary/add/mul, (B, 2*D) for concat.
    """
    n_cand = len(candidate_inputs)
    num_nodes = len(nas_nodes)
    batch = candidate_inputs[0].shape[0]

    # Pad once per cell; in a search loop hoist this outside the node loop.
    cand = jnp.stack([_pad_lanes(c) for c in candidate_inputs])   # (C, B, DP)

    x1 = jnp.clip(jnp.asarray([nd[0] for nd in nas_nodes], jnp.int32), 0, n_cand - 1)
    x2 = jnp.clip(jnp.asarray([nd[1] for nd in nas_nodes], jnp.int32), 0, n_cand - 1)
    ops = jnp.asarray([nd[2] for nd in nas_nodes], jnp.int32)

    fused = _build_fused_cell(num_nodes, batch)
    y1, y2 = fused(x1, x2, ops, cand, cand,
                   params["ffn_w_t_pad_bf16"], params["ffn_b_pad"])

    outs = []
    for k, nd in enumerate(nas_nodes):
        if mapping[int(nd[2])] == "concat":
            # halves were stored lane-aligned; repack to exact (B, 2*D) layout
            outs.append(jnp.concatenate([y1[k, :, :D], y2[k, :, :D]], axis=-1))
        else:
            outs.append(y1[k, :, :D])
    return outs


def node_forward(params, candidate_inputs, nas_node):
    """Mirror of the reference Node.forward for a single NAS node."""
    x1, _, op = int(nas_node[0]), int(nas_node[1]), int(nas_node[2])
    if mapping[op] == "identity":
        # Zero-launch fast path: Identity returns its input unchanged.
        return candidate_inputs[x1]
    return nas_cell_forward(params, candidate_inputs, [nas_node])[0]


# --------------------------- main ---------------------------------------------

if __name__ == "__main__":
    key = jax.random.PRNGKey(0)
    k_params, k_in = jax.random.split(key)
    params = init_node_params(k_params)

    # three candidate inputs, each exactly (B, D)
    k0, k1, k2 = jax.random.split(k_in, 3)
    candidates = [
        jax.random.normal(k0, (B, D), jnp.float32),
        jax.random.normal(k1, (B, D), jnp.float32),
        jax.random.normal(k2, (B, D), jnp.float32),
    ]

    # a full NAS cell exercising every primitive once -> ONE pallas_call
    test_nodes = [
        (0, 1, 0),  # add
        (1, 2, 1),  # mul
        (0, 2, 2),  # concat
        (2, 0, 3),  # ffn
        (0, 0, 4),  # sigmoid
        (1, 0, 5),  # tanh
        (2, 0, 6),  # identity
        (0, 0, 7),  # neg
    ]

    outs = nas_cell_forward(params, candidates, test_nodes)
    outs = jax.block_until_ready(outs)
    results = {mapping[nd[2]]: y for nd, y in zip(test_nodes, outs)}

    # single-node path (reference Node.forward signature) also works
    y_single = jax.block_until_ready(node_forward(params, candidates, (0, 1, 0)))

    # sanity checks against plain JAX references (exact, unpadded shapes)
    a0, a1, a2 = candidates
    assert results["add"].shape == (B, D)
    assert jnp.allclose(results["add"], a0 + a1, atol=1e-5)
    assert jnp.allclose(y_single, a0 + a1, atol=1e-5)
    assert jnp.allclose(results["mul"], a1 * a2, atol=1e-5)
    assert results["concat"].shape == (B, 2 * D)
    assert jnp.allclose(results["concat"],
                        jnp.concatenate([a0, a2], axis=-1), atol=1e-6)
    # ffn runs the matmul with bf16 weights/activations (f32 accumulate), so
    # compare to the f32 reference with a bf16-appropriate tolerance.
    ref_ffn = a2 @ params["ffn_w_t"] + params["ffn_b"]
    assert jnp.allclose(results["ffn"], ref_ffn, atol=3e-2)
    assert jnp.allclose(results["sigmoid"], jax.nn.sigmoid(a0), atol=1e-5)
    assert jnp.allclose(results["tanh"], jnp.tanh(a1), atol=1e-5)
    assert jnp.allclose(results["identity"], a2, atol=1e-6)
    assert jnp.allclose(results["neg"], -a0, atol=1e-6)

    print("KERNEL_OK")
</pallas_src>

<mosaic_0001>
module attributes {stable_mosaic.version = 11 : i64} {
  func.func @_node_kernel(%arg0: i32, %arg1: memref<8xi32, #tpu.memory_space<smem>>, %arg2: memref<8xi32, #tpu.memory_space<smem>>, %arg3: memref<8xi32, #tpu.memory_space<smem>>, %arg4: memref<1x8x128xf32, #tpu.memory_space<vmem>>, %arg5: memref<1x8x128xf32, #tpu.memory_space<vmem>>, %arg6: memref<128x128xbf16, #tpu.memory_space<any>>, %arg7: memref<8x128xf32, #tpu.memory_space<any>>, %arg8: memref<1x8x128xf32, #tpu.memory_space<vmem>>, %arg9: memref<1x8x128xf32, #tpu.memory_space<vmem>>, %arg10: memref<128x128xbf16, #tpu.memory_space<vmem>>, %arg11: memref<8x128xf32, #tpu.memory_space<vmem>>, %arg12: memref<2x!tpu.dma_semaphore, #tpu.memory_space<semaphore_mem>>) attributes {dimension_semantics = [#tpu.dimension_semantics<parallel>], iteration_bounds = array<i64: 8>, scalar_prefetch = 3 : i64, scratch_operands = 3 : i64, tpu.core_type = #tpu.core_type<tc>, window_params = [{transform_indices = @transform_0, window_bounds = array<i64: 1, 8, 128>}, {transform_indices = @transform_1, window_bounds = array<i64: 1, 8, 128>}, {}, {}, {transform_indices = @transform_4, window_bounds = array<i64: 1, 8, 128>}, {transform_indices = @transform_5, window_bounds = array<i64: 1, 8, 128>}]} {
    %0 = arith.index_cast %arg0 : i32 to index
    %1 = memref.load %arg3[%0] : memref<8xi32, #tpu.memory_space<smem>>
    %c0 = arith.constant 0 : index
    %c0_0 = arith.constant 0 : index
    %c0_1 = arith.constant 0 : index
    %2 = vector.load %arg4[%c0, %c0_0, %c0_1] : memref<1x8x128xf32, #tpu.memory_space<vmem>>, vector<1x8x128xf32>
    %3 = vector.shape_cast %2 : vector<1x8x128xf32> to vector<8x128xf32>
    %c0_2 = arith.constant 0 : index
    %c0_3 = arith.constant 0 : index
    %c0_4 = arith.constant 0 : index
    %4 = vector.load %arg5[%c0_2, %c0_3, %c0_4] : memref<1x8x128xf32, #tpu.memory_space<vmem>>, vector<1x8x128xf32>
    %5 = vector.shape_cast %4 : vector<1x8x128xf32> to vector<8x128xf32>
    %c0_i32 = arith.constant 0 : i32
    %6 = arith.cmpi eq, %1, %c0_i32 : i32
    %7 = arith.extui %6 : i1 to i32
    %c0_i32_5 = arith.constant 0 : i32
    %8 = arith.cmpi ne, %7, %c0_i32_5 : i32
    scf.if %8 {
      %30 = arith.addf %3, %5 : vector<8x128xf32>
      %c0_13 = arith.constant 0 : index
      %c0_14 = arith.constant 0 : index
      %c0_15 = arith.constant 0 : index
      %31 = vector.load %arg8[%c0_13, %c0_14, %c0_15] : memref<1x8x128xf32, #tpu.memory_space<vmem>>, vector<1x8x128xf32>
      %32 = vector.shape_cast %31 : vector<1x8x128xf32> to vector<8x128xf32>
      %33 = vector.shape_cast %30 : vector<8x128xf32> to vector<1x8x128xf32>
      tpu.vector_store %arg8[%c0_13, %c0_14, %c0_15], %33 {strides = array<i32>} : memref<1x8x128xf32, #tpu.memory_space<vmem>>, vector<1x8x128xf32>,
    } else {
    }
    %c1_i32 = arith.constant 1 : i32
    %9 = arith.cmpi eq, %1, %c1_i32 : i32
    %10 = arith.extui %9 : i1 to i32
    %c0_i32_6 = arith.constant 0 : i32
    %11 = arith.cmpi ne, %10, %c0_i32_6 : i32
    scf.if %11 {
      %30 = arith.mulf %3, %5 : vector<8x128xf32>
      %c0_13 = arith.constant 0 : index
      %c0_14 = arith.constant 0 : index
      %c0_15 = arith.constant 0 : index
      %31 = vector.load %arg8[%c0_13, %c0_14, %c0_15] : memref<1x8x128xf32, #tpu.memory_space<vmem>>, vector<1x8x128xf32>
      %32 = vector.shape_cast %31 : vector<1x8x128xf32> to vector<8x128xf32>
      %33 = vector.shape_cast %30 : vector<8x128xf32> to vector<1x8x128xf32>
      tpu.vector_store %arg8[%c0_13, %c0_14, %c0_15], %33 {strides = array<i32>} : memref<1x8x128xf32, #tpu.memory_space<vmem>>, vector<1x8x128xf32>,
    } else {
    }
    %c2_i32 = arith.constant 2 : i32
    %12 = arith.cmpi eq, %1, %c2_i32 : i32
    %13 = arith.extui %12 : i1 to i32
    %c0_i32_7 = arith.constant 0 : i32
    %14 = arith.cmpi ne, %13, %c0_i32_7 : i32
    scf.if %14 {
      %c0_13 = arith.constant 0 : index
      %c0_14 = arith.constant 0 : index
      %c0_15 = arith.constant 0 : index
      %30 = vector.load %arg8[%c0_13, %c0_14, %c0_15] : memref<1x8x128xf32, #tpu.memory_space<vmem>>, vector<1x8x128xf32>
      %31 = vector.shape_cast %30 : vector<1x8x128xf32> to vector<8x128xf32>
      %32 = vector.shape_cast %3 : vector<8x128xf32> to vector<1x8x128xf32>
      tpu.vector_store %arg8[%c0_13, %c0_14, %c0_15], %32 {strides = array<i32>} : memref<1x8x128xf32, #tpu.memory_space<vmem>>, vector<1x8x128xf32>,
      %c0_16 = arith.constant 0 : index
      %c0_17 = arith.constant 0 : index
      %c0_18 = arith.constant 0 : index
      %33 = vector.load %arg9[%c0_16, %c0_17, %c0_18] : memref<1x8x128xf32, #tpu.memory_space<vmem>>, vector<1x8x128xf32>
      %34 = vector.shape_cast %33 : vector<1x8x128xf32> to vector<8x128xf32>
      %35 = vector.shape_cast %5 : vector<8x128xf32> to vector<1x8x128xf32>
      tpu.vector_store %arg9[%c0_16, %c0_17, %c0_18], %35 {strides = array<i32>} : memref<1x8x128xf32, #tpu.memory_space<vmem>>, vector<1x8x128xf32>,
    } else {
    }
    %c3_i32 = arith.constant 3 : i32
    %15 = arith.cmpi eq, %1, %c3_i32 : i32
    %16 = arith.extui %15 : i1 to i32
    %c0_i32_8 = arith.constant 0 : i32
    %17 = arith.cmpi ne, %16, %c0_i32_8 : i32
    scf.if %17 {
      %c0_i32_13 = arith.constant 0 : i32
      %30 = tpu.memref_slice %arg12[%c0_i32_13] : memref<2x!tpu.dma_semaphore, #tpu.memory_space<semaphore_mem>> -> memref<1x!tpu.dma_semaphore, #tpu.memory_space<semaphore_mem>>
      %31 = tpu.memref_squeeze %30 : memref<1x!tpu.dma_semaphore, #tpu.memory_space<semaphore_mem>> -> memref<!tpu.dma_semaphore, #tpu.memory_space<semaphore_mem>>
      tpu.enqueue_dma source(%arg6 : memref<128x128xbf16, #tpu.memory_space<any>>) target(%arg10 : memref<128x128xbf16, #tpu.memory_space<vmem>>) target_semaphore(%31 : memref<!tpu.dma_semaphore, #tpu.memory_space<semaphore_mem>>)
      %c1_i32_14 = arith.constant 1 : i32
      %32 = tpu.memref_slice %arg12[%c1_i32_14] : memref<2x!tpu.dma_semaphore, #tpu.memory_space<semaphore_mem>> -> memref<1x!tpu.dma_semaphore, #tpu.memory_space<semaphore_mem>>
      %33 = tpu.memref_squeeze %32 : memref<1x!tpu.dma_semaphore, #tpu.memory_space<semaphore_mem>> -> memref<!tpu.dma_semaphore, #tpu.memory_space<semaphore_mem>>
      tpu.enqueue_dma source(%arg7 : memref<8x128xf32, #tpu.memory_space<any>>) target(%arg11 : memref<8x128xf32, #tpu.memory_space<vmem>>) target_semaphore(%33 : memref<!tpu.dma_semaphore, #tpu.memory_space<semaphore_mem>>)
      %c0_i32_15 = arith.constant 0 : i32
      %34 = tpu.memref_slice %arg12[%c0_i32_15] : memref<2x!tpu.dma_semaphore, #tpu.memory_space<semaphore_mem>> -> memref<1x!tpu.dma_semaphore, #tpu.memory_space<semaphore_mem>>
      %35 = tpu.memref_squeeze %34 : memref<1x!tpu.dma_semaphore, #tpu.memory_space<semaphore_mem>> -> memref<!tpu.dma_semaphore, #tpu.memory_space<semaphore_mem>>
      tpu.wait_dma2 semaphore(%35 : memref<!tpu.dma_semaphore, #tpu.memory_space<semaphore_mem>>) src(%arg6 : memref<128x128xbf16, #tpu.memory_space<any>>) dst(%arg10 : memref<128x128xbf16, #tpu.memory_space<vmem>>)
      %c1_i32_16 = arith.constant 1 : i32
      %36 = tpu.memref_slice %arg12[%c1_i32_16] : memref<2x!tpu.dma_semaphore, #tpu.memory_space<semaphore_mem>> -> memref<1x!tpu.dma_semaphore, #tpu.memory_space<semaphore_mem>>
      %37 = tpu.memref_squeeze %36 : memref<1x!tpu.dma_semaphore, #tpu.memory_space<semaphore_mem>> -> memref<!tpu.dma_semaphore, #tpu.memory_space<semaphore_mem>>
      tpu.wait_dma2 semaphore(%37 : memref<!tpu.dma_semaphore, #tpu.memory_space<semaphore_mem>>) src(%arg7 : memref<8x128xf32, #tpu.memory_space<any>>) dst(%arg11 : memref<8x128xf32, #tpu.memory_space<vmem>>)
      %38 = arith.truncf %3 : vector<8x128xf32> to vector<8x128xbf16>
      %c0_17 = arith.constant 0 : index
      %c0_18 = arith.constant 0 : index
      %39 = vector.load %arg10[%c0_17, %c0_18] : memref<128x128xbf16, #tpu.memory_space<vmem>>, vector<128x128xbf16>
      %cst = arith.constant dense<0.000000e+00> : vector<8x128xf32>
      %40 = tpu.matmul %38, %39, %cst {dimension_numbers = #tpu.dot_dimension_numbers<[1], [0], [0], [1], [0, 0, 1, 1], [], []>} : vector<8x128xbf16>, vector<128x128xbf16>, vector<8x128xf32> -> vector<8x128xf32>
      %c0_19 = arith.constant 0 : index
      %c0_20 = arith.constant 0 : index
      %41 = vector.load %arg11[%c0_19, %c0_20] : memref<8x128xf32, #tpu.memory_space<vmem>>, vector<1x128xf32>
      %42 = vector.broadcast %41 : vector<1x128xf32> to vector<8x128xf32>
      %43 = arith.addf %40, %42 : vector<8x128xf32>
      %c0_21 = arith.constant 0 : index
      %c0_22 = arith.constant 0 : index
      %c0_23 = arith.constant 0 : index
      %44 = vector.load %arg8[%c0_21, %c0_22, %c0_23] : memref<1x8x128xf32, #tpu.memory_space<vmem>>, vector<1x8x128xf32>
      %45 = vector.shape_cast %44 : vector<1x8x128xf32> to vector<8x128xf32>
      %46 = vector.shape_cast %43 : vector<8x128xf32> to vector<1x8x128xf32>
      tpu.vector_store %arg8[%c0_21, %c0_22, %c0_23], %46 {strides = array<i32>} : memref<1x8x128xf32, #tpu.memory_space<vmem>>, vector<1x8x128xf32>,
    } else {
    }
    %c4_i32 = arith.constant 4 : i32
    %18 = arith.cmpi eq, %1, %c4_i32 : i32
    %19 = arith.extui %18 : i1 to i32
    %c0_i32_9 = arith.constant 0 : i32
    %20 = arith.cmpi ne, %19, %c0_i32_9 : i32
    scf.if %20 {
      %30 = arith.negf %3 : vector<8x128xf32>
      %31 = math.exp %30 : vector<8x128xf32>
      %cst = arith.constant 1.000000e+00 : f32
      %32 = vector.broadcast %cst : f32 to vector<8x128xf32>
      %33 = arith.addf %32, %31 : vector<8x128xf32>
      %34 = arith.divf %32, %33 : vector<8x128xf32>
      %c0_13 = arith.constant 0 : index
      %c0_14 = arith.constant 0 : index
      %c0_15 = arith.constant 0 : index
      %35 = vector.load %arg8[%c0_13, %c0_14, %c0_15] : memref<1x8x128xf32, #tpu.memory_space<vmem>>, vector<1x8x128xf32>
      %36 = vector.shape_cast %35 : vector<1x8x128xf32> to vector<8x128xf32>
      %37 = vector.shape_cast %34 : vector<8x128xf32> to vector<1x8x128xf32>
      tpu.vector_store %arg8[%c0_13, %c0_14, %c0_15], %37 {strides = array<i32>} : memref<1x8x128xf32, #tpu.memory_space<vmem>>, vector<1x8x128xf32>,
    } else {
    }
    %c5_i32 = arith.constant 5 : i32
    %21 = arith.cmpi eq, %1, %c5_i32 : i32
    %22 = arith.extui %21 : i1 to i32
    %c0_i32_10 = arith.constant 0 : i32
    %23 = arith.cmpi ne, %22, %c0_i32_10 : i32
    scf.if %23 {
      %30 = math.tanh %3 : vector<8x128xf32>
      %c0_13 = arith.constant 0 : index
      %c0_14 = arith.constant 0 : index
      %c0_15 = arith.constant 0 : index
      %31 = vector.load %arg8[%c0_13, %c0_14, %c0_15] : memref<1x8x128xf32, #tpu.memory_space<vmem>>, vector<1x8x128xf32>
      %32 = vector.shape_cast %31 : vector<1x8x128xf32> to vector<8x128xf32>
      %33 = vector.shape_cast %30 : vector<8x128xf32> to vector<1x8x128xf32>
      tpu.vector_store %arg8[%c0_13, %c0_14, %c0_15], %33 {strides = array<i32>} : memref<1x8x128xf32, #tpu.memory_space<vmem>>, vector<1x8x128xf32>,
    } else {
    }
    %c6_i32 = arith.constant 6 : i32
    %24 = arith.cmpi eq, %1, %c6_i32 : i32
    %25 = arith.extui %24 : i1 to i32
    %c0_i32_11 = arith.constant 0 : i32
    %26 = arith.cmpi ne, %25, %c0_i32_11 : i32
    scf.if %26 {
      %c0_13 = arith.constant 0 : index
      %c0_14 = arith.constant 0 : index
      %c0_15 = arith.constant 0 : index
      %30 = vector.load %arg8[%c0_13, %c0_14, %c0_15] : memref<1x8x128xf32, #tpu.memory_space<vmem>>, vector<1x8x128xf32>
      %31 = vector.shape_cast %30 : vector<1x8x128xf32> to vector<8x128xf32>
      %32 = vector.shape_cast %3 : vector<8x128xf32> to vector<1x8x128xf32>
      tpu.vector_store %arg8[%c0_13, %c0_14, %c0_15], %32 {strides = array<i32>} : memref<1x8x128xf32, #tpu.memory_space<vmem>>, vector<1x8x128xf32>,
    } else {
    }
    %c7_i32 = arith.constant 7 : i32
    %27 = arith.cmpi eq, %1, %c7_i32 : i32
    %28 = arith.extui %27 : i1 to i32
    %c0_i32_12 = arith.constant 0 : i32
    %29 = arith.cmpi ne, %28, %c0_i32_12 : i32
    scf.if %29 {
      %cst = arith.constant 0.000000e+00 : f32
      %30 = vector.broadcast %cst : f32 to vector<8x128xf32>
      %31 = arith.subf %30, %3 : vector<8x128xf32>
      %c0_13 = arith.constant 0 : index
      %c0_14 = arith.constant 0 : index
      %c0_15 = arith.constant 0 : index
      %32 = vector.load %arg8[%c0_13, %c0_14, %c0_15] : memref<1x8x128xf32, #tpu.memory_space<vmem>>, vector<1x8x128xf32>
      %33 = vector.shape_cast %32 : vector<1x8x128xf32> to vector<8x128xf32>
      %34 = vector.shape_cast %31 : vector<8x128xf32> to vector<1x8x128xf32>
      tpu.vector_store %arg8[%c0_13, %c0_14, %c0_15], %34 {strides = array<i32>} : memref<1x8x128xf32, #tpu.memory_space<vmem>>, vector<1x8x128xf32>,
    } else {
    }
    return
  }
  func.func @transform_0(%arg0: i32, %arg1: memref<8xi32, #tpu.memory_space<smem>>, %arg2: memref<8xi32, #tpu.memory_space<smem>>, %arg3: memref<8xi32, #tpu.memory_space<smem>>) -> (i32, i32, i32) {
    %0 = arith.index_cast %arg0 : i32 to index
    %1 = memref.load %arg1[%0] : memref<8xi32, #tpu.memory_space<smem>>
    %c0_i32 = arith.constant 0 : i32
    %c0_i32_0 = arith.constant 0 : i32
    %c0_i32_1 = arith.constant 0 : i32
    return %1, %c0_i32, %c0_i32_0 : i32, i32, i32
  }
  func.func @transform_1(%arg0: i32, %arg1: memref<8xi32, #tpu.memory_space<smem>>, %arg2: memref<8xi32, #tpu.memory_space<smem>>, %arg3: memref<8xi32, #tpu.memory_space<smem>>) -> (i32, i32, i32) {
    %0 = arith.index_cast %arg0 : i32 to index
    %1 = memref.load %arg2[%0] : memref<8xi32, #tpu.memory_space<smem>>
    %c0_i32 = arith.constant 0 : i32
    %c0_i32_0 = arith.constant 0 : i32
    %c0_i32_1 = arith.constant 0 : i32
    return %1, %c0_i32, %c0_i32_0 : i32, i32, i32
  }
  func.func @transform_4(%arg0: i32, %arg1: memref<8xi32, #tpu.memory_space<smem>>, %arg2: memref<8xi32, #tpu.memory_space<smem>>, %arg3: memref<8xi32, #tpu.memory_space<smem>>) -> (i32, i32, i32) {
    %c0_i32 = arith.constant 0 : i32
    %c0_i32_0 = arith.constant 0 : i32
    %c0_i32_1 = arith.constant 0 : i32
    return %arg0, %c0_i32, %c0_i32_0 : i32, i32, i32
  }
  func.func @transform_5(%arg0: i32, %arg1: memref<8xi32, #tpu.memory_space<smem>>, %arg2: memref<8xi32, #tpu.memory_space<smem>>, %arg3: memref<8xi32, #tpu.memory_space<smem>>) -> (i32, i32, i32) {
    %c0_i32 = arith.constant 0 : i32
    %c0_i32_0 = arith.constant 0 : i32
    %c0_i32_1 = arith.constant 0 : i32
    return %arg0, %c0_i32, %c0_i32_0 : i32, i32, i32
  }
}

</mosaic_0001>

<llo_original>
// kernel: tpu_custom_call.1
$region0: #{tpu_custom_call.1}
  #allocation0 [shape = 'u32[]', space=smem, size = 0x4, offset = 0x4, fixed_abs, tag = 'smem constant byte address 0x4 - core index']
  #allocation1 [shape = 'u32[144,128]{1,0:T(1,128)}', space=vmem, size = 0x12000, scoped, tag = 'internal scratch']
  #allocation2 [shape = 'bf16[128,128]{1,0:T(8,128)(2,1)}', space=vmem, size = 0x8000, scoped, tag = 'scratch operand']
  #allocation3 [shape = 'f32[8,128]{1,0:T(8,128)}', space=vmem, size = 0x1000, scoped, tag = 'scratch operand']
  #allocation4 [shape = 's32[2]{0}', space=sflag, size = 0x8, scoped, tag = 'scratch operand']
  #allocation5 [shape = 's32[1]{0}', space=sflag, size = 0x4, scoped, tag = 'scoped memory for tpu_custom_call.1']
  #allocation6 [shape = 'u8[512]{0}', space=smem, size = 0x200, scoped, tag = 'prefetched SMEM operand 0']
  #allocation7 [shape = 'u8[512]{0}', space=smem, size = 0x200, scoped, tag = 'prefetched SMEM operand 1']
  #allocation8 [shape = 'u8[512]{0}', space=smem, size = 0x200, scoped, tag = 'prefetched SMEM operand 2']
  #allocation17 [shape = 's32[]', space=sflag, size = 0x4, offset = 0, fixed_abs, tag = 'sflag constant byte address 0x0 - dummy sync flag']
  #allocation18 [shape = 's32[]', space=sflag, size = 0x4, offset = 0, fixed_abs, tag = 'sflag constant byte address 0x0 - dummy sync flag']
  #allocation19 [shape = 'u32[]', space=smem, size = 0x4, offset = 0x44, fixed_abs, tag = 'smem constant byte address 0x44 - assertion arg 0']
  #allocation20 [shape = 'u32[]', space=smem, size = 0x4, offset = 0x48, fixed_abs, tag = 'smem constant byte address 0x48 - assertion arg 1']
  #allocation21 [shape = 's32[]', space=sflag, size = 0x4, offset = 0, fixed_abs, tag = 'sflag constant byte address 0x0 - dummy sync flag']
  %s0 = inlined_call_operand.hbm [shape: s32[8], index: 0, kind: input, shape index: {}]
  %s1 = inlined_call_operand.vmem [shape: s32[8], index: 1, kind: input, shape index: {}]
  %s2 = inlined_call_operand.vmem [shape: s32[8], index: 2, kind: input, shape index: {}]
  %s3 = inlined_call_operand.hbm [shape: f32[3,8,128], index: 3, kind: input, shape index: {}]
  %s4 = inlined_call_operand.hbm [shape: f32[3,8,128], index: 4, kind: input, shape index: {}]
  %s5 = inlined_call_operand.hbm [shape: bf16[128,128], index: 5, kind: input, shape index: {}]
  %s6 = inlined_call_operand.vmem [shape: f32[8,128], index: 6, kind: input, shape index: {}]
  %s7 = inlined_call_operand.hbm [shape: f32[8,8,128], index: 7, kind: output, shape index: {0}]
  %s8 = inlined_call_operand.hbm [shape: f32[8,8,128], index: 8, kind: output, shape index: {1}]
  %9 = xla_tuple %s7, %s8
  %s10 = sld [smem:[#allocation0]]
  $region127: #{tpu_custom_call.1} parent=0
    _
  %s12 = ssub.s32 1, %s10
  %s13 = scalar_select 0, %s12, %s10
  %15 = dma.hbm_to_smem %s0, 16, [#allocation6], [#allocation5]
  %s16 = sshll.u32 %s1, 4
  %s17 = int_to_ptr.vmem [resolvable:$true] %s16
  %19 = dma.vmem_to_smem %s17, 16, [#allocation7], [#allocation5]
  %s20 = sshll.u32 %s2, 4
  %s21 = int_to_ptr.vmem [resolvable:$true] %s20
  %23 = dma.vmem_to_smem %s21, 16, [#allocation8], [#allocation5]
  %24 = dma.done [#allocation5], 48
  %25 = sfence
  $region1: #{tpu_custom_call.1} parent=0
    #allocation9 [shape = 'u8[8192]{0}', space=vmem, size = 0x2000, scoped, tag = 'input window, operand 3']
    #allocation10 [shape = 's32[2]{0}', space=sflag, size = 0x8, scoped, tag = 'scoped memory for tpu_custom_call.1']
    #allocation11 [shape = 's32[2]{0}', space=sflag, size = 0x8, scoped, tag = 'scoped memory for tpu_custom_call.1']
    #allocation12 [shape = 'u8[8192]{0}', space=vmem, size = 0x2000, scoped, tag = 'input window, operand 4']
    #allocation13 [shape = 's32[2]{0}', space=sflag, size = 0x8, scoped, tag = 'scoped memory for tpu_custom_call.1']
    #allocation14 [shape = 'u8[8192]{0}', space=vmem, size = 0x2000, scoped, tag = 'output window, operand 0']
    #allocation15 [shape = 'u8[8192]{0}', space=vmem, size = 0x2000, scoped, tag = 'output window, operand 1']
    #allocation16 [shape = 's32[2]{0}', space=sflag, size = 0x8, scoped, tag = 'scoped memory for tpu_custom_call.1']
    %26 = vsyncpa [#allocation10], 0
    %s27 = scalar_lea.sflag [#allocation10], 1
    %28 = vsyncpa %s27, 0
    %29 = vsyncpa [#allocation13], 0
    %s30 = scalar_lea.sflag [#allocation13], 1
    %31 = vsyncpa %s30, 0
    %32 = vsyncpa [#allocation11], 0
    %s33 = scalar_lea.sflag [#allocation11], 1
    %34 = vsyncpa %s33, 0
    %35 = vsyncpa [#allocation16], 0
    %s36 = scalar_lea.sflag [#allocation16], 1
    %37 = vsyncpa %s36, 0
    loop: start=0, step=1, limit=10
    $region2: #{tpu_custom_call.1} parent=1 // loop_pre_header
      _
    $region3: #{tpu_custom_call.1} parent=1 // loop_header
      %s39 = sphi 0, %s43
      %p40 = scmp.ge.s32.totalorder %s39, 10
      %s51 = sphi 0, %s53
      %s54 = sphi 0, %s51
      %s55 = sphi 0, %s54
      %s71 = sphi 0, %s55
      %s79 = sphi 0, %s81
      %s82 = sphi 0, %s79
      %s83 = sphi 0, %s82
      %s99 = sphi 0, %s83
      %s105 = sphi 0, %s107
      %s108 = sphi 0, %s105
      %s109 = sphi 0, %s108
      %s125 = sphi 0, %s109
      %s131 = sphi 0, %s133
      %s134 = sphi 0, %s131
      %s135 = sphi 0, %s134
      %s151 = sphi 0, %s135
    $region4: #{tpu_custom_call.1} parent=1 // loop_header_branch
      %42 = sbr.rel (%p40) target = $region8
    $region5: #{tpu_custom_call.1} parent=1 // loop_body
      %s44 = ssub.s32 %s39, 1
      %s45 = ssub.s32 %s39, 2
      %s46 = sadd.s32 %s39, 1
      %s47 = sld [smem:[#allocation6 + %s39]]
      %s48 = sld [smem:[#allocation6 + %s46]]
      %s49 = ssub.s32 %s47, %s48
      %p50 = scmp.eq.s32.totalorder %s49, 0
      %s52 = sadd.s32 %s51, 1
      %s53 = scalar_select %p50, %s51, %s52
      %p56 = pneg %p50
      %p57 = scmp.eq.s32.totalorder %s39, 7
      %p58 = por %p56, %p57
      %p59 = scmp.ne.s32.totalorder %s51, %s54
      %p60 = scmp.eq.s32.totalorder %s39, 0
      %p61 = por %p59, %p60
      %p62 = scmp.ne.s32.totalorder %s51, %s54
      %p63 = scmp.eq.s32.totalorder %s44, 7
      %p64 = por %p62, %p63
      %p65 = scmp.ne.s32.totalorder %s54, %s55
      %p66 = scmp.eq.s32.totalorder %s44, 0
      %p67 = por %p65, %p66
      %p68 = scmp.ne.s32.totalorder %s54, %s55
      %p69 = scmp.eq.s32.totalorder %s45, 7
      %p70 = por %p68, %p69
      %p72 = scmp.ne.s32.totalorder %s55, %s71
      %p73 = scmp.eq.s32.totalorder %s45, 0
      %p74 = por %p72, %p73
      %s75 = sld [smem:[#allocation7 + %s39]]
      %s76 = sld [smem:[#allocation7 + %s46]]
      %s77 = ssub.s32 %s75, %s76
      %p78 = scmp.eq.s32.totalorder %s77, 0
      %s80 = sadd.s32 %s79, 1
      %s81 = scalar_select %p78, %s79, %s80
      %p84 = pneg %p78
      %p85 = scmp.eq.s32.totalorder %s39, 7
      %p86 = por %p84, %p85
      %p87 = scmp.ne.s32.totalorder %s79, %s82
      %p88 = scmp.eq.s32.totalorder %s39, 0
      %p89 = por %p87, %p88
      %p90 = scmp.ne.s32.totalorder %s79, %s82
      %p91 = scmp.eq.s32.totalorder %s44, 7
      %p92 = por %p90, %p91
      %p93 = scmp.ne.s32.totalorder %s82, %s83
      %p94 = scmp.eq.s32.totalorder %s44, 0
      %p95 = por %p93, %p94
      %p96 = scmp.ne.s32.totalorder %s82, %s83
      %p97 = scmp.eq.s32.totalorder %s45, 7
      %p98 = por %p96, %p97
      %p100 = scmp.ne.s32.totalorder %s83, %s99
      %p101 = scmp.eq.s32.totalorder %s45, 0
      %p102 = por %p100, %p101
      %s103 = ssub.s32 %s39, %s46
      %p104 = scmp.eq.s32.totalorder %s103, 0
      %s106 = sadd.s32 %s105, 1
      %s107 = scalar_select %p104, %s105, %s106
      %p110 = pneg %p104
      %p111 = scmp.eq.s32.totalorder %s39, 7
      %p112 = por %p110, %p111
      %p113 = scmp.ne.s32.totalorder %s105, %s108
      %p114 = scmp.eq.s32.totalorder %s39, 0
      %p115 = por %p113, %p114
      %p116 = scmp.ne.s32.totalorder %s105, %s108
      %p117 = scmp.eq.s32.totalorder %s44, 7
      %p118 = por %p116, %p117
      %p119 = scmp.ne.s32.totalorder %s108, %s109
      %p120 = scmp.eq.s32.totalorder %s44, 0
      %p121 = por %p119, %p120
      %p122 = scmp.ne.s32.totalorder %s108, %s109
      %p123 = scmp.eq.s32.totalorder %s45, 7
      %p124 = por %p122, %p123
      %p126 = scmp.ne.s32.totalorder %s109, %s125
      %p127 = scmp.eq.s32.totalorder %s45, 0
      %p128 = por %p126, %p127
      %s129 = ssub.s32 %s39, %s46
      %p130 = scmp.eq.s32.totalorder %s129, 0
      %s132 = sadd.s32 %s131, 1
      %s133 = scalar_select %p130, %s131, %s132
      %p136 = pneg %p130
      %p137 = scmp.eq.s32.totalorder %s39, 7
      %p138 = por %p136, %p137
      %p139 = scmp.ne.s32.totalorder %s131, %s134
      %p140 = scmp.eq.s32.totalorder %s39, 0
      %p141 = por %p139, %p140
      %p142 = scmp.ne.s32.totalorder %s131, %s134
      %p143 = scmp.eq.s32.totalorder %s44, 7
      %p144 = por %p142, %p143
      %p145 = scmp.ne.s32.totalorder %s134, %s135
      %p146 = scmp.eq.s32.totalorder %s44, 0
      %p147 = por %p145, %p146
      %p148 = scmp.ne.s32.totalorder %s134, %s135
      %p149 = scmp.eq.s32.totalorder %s45, 7
      %p150 = por %p148, %p149
      %p152 = scmp.ne.s32.totalorder %s135, %s151
      %p153 = scmp.eq.s32.totalorder %s45, 0
      %p154 = por %p152, %p153
      %p155 = scmp.le.s32.totalorder 1, %s39
      %p156 = scmp.lt.s32.totalorder %s39, 9
      %p157 = pnand %p155, %p156
      %p158 = pneg %p157
      // Predicated region
      $region9: #{tpu_custom_call.1} parent=5 // pred_check
        _
      $region10: #{tpu_custom_call.1} parent=5 // pred_check_branch
        %160 = sbr.rel (%p157) target = $region12
      $region11: #{tpu_custom_call.1} parent=5 // pred_region
        %s161 = ssub.s32 %s39, 1
      $region12: #{tpu_custom_call.1} parent=5 // pred_fallthru
        _
      %p162 = scmp.lt.s32.totalorder %s39, 8
      // Predicated region
      $region13: #{tpu_custom_call.1} parent=5 // pred_check
        %p163 = pneg %p162
      $region14: #{tpu_custom_call.1} parent=5 // pred_check_branch
        %165 = sbr.rel (%p163) target = $region16
      $region15: #{tpu_custom_call.1} parent=5 // pred_region
        // Predicated region
        $region17: #{tpu_custom_call.1} parent=15 // pred_check
          %p166 = pneg %p61
        $region18: #{tpu_custom_call.1} parent=15 // pred_check_branch
          %168 = sbr.rel (%p166) target = $region20
        $region19: #{tpu_custom_call.1} parent=15 // pred_region
          %s169 = sand.u32 %s51, 1
          %s170 = scalar_lea.sflag [#allocation10], %s169
          %s171 = sand.u32 %s51, 1
          %s172 = smul.addr %s171, 8
          %s173 = scalar_lea.vmem [#allocation9], %s172
          %s174 = sld [smem:[#allocation6 + %s39]]
          %s176 = ssub.s32 128, 128
          %177 = vsyncadd %s170, %s176
          %s178 = smul.addr %s174, 128
          %s179 = scalar_lea.hbm %s3, %s178
          %s181 = sshll.u32 %s173, 4
          %s182 = int_to_ptr.vmem [resolvable:$true] %s181
          %184 = dma.hbm_to_vmem [thread:$0]  %s179, 128, %s182, %s170
        $region20: #{tpu_custom_call.1} parent=15 // pred_fallthru
          _
        // Predicated region
        $region21: #{tpu_custom_call.1} parent=15 // pred_check
          %p185 = pneg %p89
        $region22: #{tpu_custom_call.1} parent=15 // pred_check_branch
          %187 = sbr.rel (%p185) target = $region24
        $region23: #{tpu_custom_call.1} parent=15 // pred_region
          %s188 = sand.u32 %s79, 1
          %s189 = scalar_lea.sflag [#allocation13], %s188
          %s190 = sand.u32 %s79, 1
          %s191 = smul.addr %s190, 8
          %s192 = scalar_lea.vmem [#allocation12], %s191
          %s193 = sld [smem:[#allocation7 + %s39]]
          %s195 = ssub.s32 128, 128
          %196 = vsyncadd %s189, %s195
          %s197 = smul.addr %s193, 128
          %s198 = scalar_lea.hbm %s4, %s197
          %s200 = sshll.u32 %s192, 4
          %s201 = int_to_ptr.vmem [resolvable:$true] %s200
          %203 = dma.hbm_to_vmem [thread:$0]  %s198, 128, %s201, %s189
        $region24: #{tpu_custom_call.1} parent=15 // pred_fallthru
          _
      $region16: #{tpu_custom_call.1} parent=5 // pred_fallthru
        _
      %p204 = scmp.le.s32.totalorder 1, %s39
      %p205 = scmp.lt.s32.totalorder %s39, 9
      %p206 = pnand %p204, %p205
      %p207 = pneg %p206
      // Predicated region
      $region25: #{tpu_custom_call.1} parent=5 // pred_check
        _
      $region26: #{tpu_custom_call.1} parent=5 // pred_check_branch
        %209 = sbr.rel (%p206) target = $region28
      $region27: #{tpu_custom_call.1} parent=5 // pred_region
        %s210 = ssub.s32 %s39, 1
        %s211 = sand.u32 %s54, 1
        %s212 = scalar_lea.sflag [#allocation10], %s211
        %s213 = sand.u32 %s54, 1
        %s214 = smul.addr %s213, 8
        %s215 = scalar_lea.vmem [#allocation9], %s214
        // Predicated region
        $region29: #{tpu_custom_call.1} parent=27 // pred_check
          %p216 = pneg %p67
        $region30: #{tpu_custom_call.1} parent=27 // pred_check_branch
          %218 = sbr.rel (%p216) target = $region32
        $region31: #{tpu_custom_call.1} parent=27 // pred_region
          %219 = dma.done %s212, 128
        $region32: #{tpu_custom_call.1} parent=27 // pred_fallthru
          _
        %s220 = sand.u32 %s82, 1
        %s221 = scalar_lea.sflag [#allocation13], %s220
        %s222 = sand.u32 %s82, 1
        %s223 = smul.addr %s222, 8
        %s224 = scalar_lea.vmem [#allocation12], %s223
        // Predicated region
        $region33: #{tpu_custom_call.1} parent=27 // pred_check
          %p225 = pneg %p95
        $region34: #{tpu_custom_call.1} parent=27 // pred_check_branch
          %227 = sbr.rel (%p225) target = $region36
        $region35: #{tpu_custom_call.1} parent=27 // pred_region
          %228 = dma.done %s221, 128
        $region36: #{tpu_custom_call.1} parent=27 // pred_fallthru
          _
        %s229 = sand.u32 %s54, 1
        %s230 = scalar_lea.sflag [#allocation10], %s229
        %s231 = sand.u32 %s54, 1
        %s232 = smul.addr %s231, 8
        %s233 = scalar_lea.vmem [#allocation9], %s232
        %p234 = pneg %p67
        %p235 = pneg %p64
        %s236 = sand.u32 %s82, 1
        %s237 = scalar_lea.sflag [#allocation13], %s236
        %s238 = sand.u32 %s82, 1
        %s239 = smul.addr %s238, 8
        %s240 = scalar_lea.vmem [#allocation12], %s239
        %p241 = pneg %p95
        %p242 = pneg %p92
        %p243 = pneg %p121
        %p244 = pneg %p118
        %s245 = sand.u32 %s108, 1
        %s246 = scalar_lea.sflag [#allocation11], %s245
        %s247 = sand.u32 %s108, 1
        %s248 = smul.addr %s247, 8
        %s249 = scalar_lea.vmem [#allocation14], %s248
        %p250 = pneg %p147
        %p251 = pneg %p144
        %s252 = sand.u32 %s134, 1
        %s253 = scalar_lea.sflag [#allocation16], %s252
        %s254 = sand.u32 %s134, 1
        %s255 = smul.addr %s254, 8
        %s256 = scalar_lea.vmem [#allocation15], %s255
        %s257 = sld [smem:[#allocation6 + %s44]]
        %s258 = sld [smem:[#allocation7 + %s44]]
        %s260 = sld [smem:[#allocation8 + %s44]]
        %v261 = vld [vmem:[%s215] sm:$0xff]
        %v262 = vld [vmem:[%s224] sm:$0xff]
        %p263 = scmp.eq.s32.totalorder %s260, 0
        // Predicated region
        $region37: #{tpu_custom_call.1} parent=27 // pred_check
          %p264 = pneg %p263
        $region38: #{tpu_custom_call.1} parent=27 // pred_check_branch
          %266 = sbr.rel (%p264) target = $region40
        $region39: #{tpu_custom_call.1} parent=27 // pred_region
          %v267 = vadd.f32 %v261, %v262
          %268 = vst [vmem:[%s249] sm:$0xff] %v267
        $region40: #{tpu_custom_call.1} parent=27 // pred_fallthru
          _
        %p269 = scmp.eq.s32.totalorder %s260, 1
        // Predicated region
        $region41: #{tpu_custom_call.1} parent=27 // pred_check
          %p270 = pneg %p269
        $region42: #{tpu_custom_call.1} parent=27 // pred_check_branch
          %272 = sbr.rel (%p270) target = $region44
        $region43: #{tpu_custom_call.1} parent=27 // pred_region
          %v273 = vmul.f32 %v261, %v262
          %274 = vst [vmem:[%s249] sm:$0xff] %v273
        $region44: #{tpu_custom_call.1} parent=27 // pred_fallthru
          _
        %p275 = scmp.eq.s32.totalorder %s260, 2
        // Predicated region
        $region45: #{tpu_custom_call.1} parent=27 // pred_check
          %p276 = pneg %p275
        $region46: #{tpu_custom_call.1} parent=27 // pred_check_branch
          %278 = sbr.rel (%p276) target = $region48
        $region47: #{tpu_custom_call.1} parent=27 // pred_region
          %279 = vst [vmem:[%s249] sm:$0xff] %v261
          %280 = vst [vmem:[%s256] sm:$0xff] %v262
        $region48: #{tpu_custom_call.1} parent=27 // pred_fallthru
          _
        %p281 = scmp.eq.s32.totalorder %s260, 3
        // Predicated region
        $region49: #{tpu_custom_call.1} parent=27 // pred_check
          %p282 = pneg %p281
        $region50: #{tpu_custom_call.1} parent=27 // pred_check_branch
          %284 = sbr.rel (%p282) target = $region52
        $region51: #{tpu_custom_call.1} parent=27 // pred_region
          // Predicated region
          $region53: #{tpu_custom_call.1} parent=51 // pred_check
            _
          $region54: #{tpu_custom_call.1} parent=51 // pred_check_branch
            %286 = sbr.rel target = $region56
          $region55: #{tpu_custom_call.1} parent=51 // pred_region
            %287 = sst [smem:[#allocation19]] [#allocation18]
            %288 = sst [smem:[#allocation20]] [#allocation17]
          $region56: #{tpu_custom_call.1} parent=51 // pred_fallthru
            _
          %290 = shalt.err (0)
          %s292 = sshll.u32 [#allocation2], 4
          %s293 = int_to_ptr.vmem [resolvable:$true] %s292
          %295 = dma.hbm_to_vmem [thread:$0]  %s5, 1024, %s293, [#allocation4]
          %s296 = scalar_lea.sflag [#allocation4], 1
          %p298 = scmp.lt.u32.totalorder 8, 8
          %p299 = pneg %p298
          // Predicated region
          $region57: #{tpu_custom_call.1} parent=51 // pred_check
            _
          $region58: #{tpu_custom_call.1} parent=51 // pred_check_branch
            %301 = sbr.rel (%p298) target = $region60
          $region59: #{tpu_custom_call.1} parent=51 // pred_region
            %s317 = sand.u32 8, 7
            %p318 = scmp.eq.s32.totalorder %s317, 0
            // Predicated region
            $region72: #{tpu_custom_call.1} parent=59 // pred_check
              %p319 = pneg %p318
            $region73: #{tpu_custom_call.1} parent=59 // pred_check_branch
              %321 = sbr.rel (%p319) target = $region75
            $region74: #{tpu_custom_call.1} parent=59 // pred_region
              loop: start=0, step=1, limit=1
              $region76: #{tpu_custom_call.1} parent=74 // loop_pre_header
                _
              $region77: #{tpu_custom_call.1} parent=74 // loop_header
                %s323 = sphi 0, %s327
                %p324 = scmp.ge.s32.totalorder %s323, 1
                %s328 = sphi %s6, %s6
                %s329 = sphi [#allocation3], [#allocation3]
              $region78: #{tpu_custom_call.1} parent=74 // loop_header_branch
                %326 = sbr.rel (%p324) target = $region82
              $region79: #{tpu_custom_call.1} parent=74 // loop_body
                %v330 = vld [vmem:[%s328] sm:$0xff]
                %331 = vst [vmem:[%s329] sm:$0xff] %v330
              $region80: #{tpu_custom_call.1} parent=74 // loop_footer
                %s327 = sadd.s32 1, %s323
              $region81: #{tpu_custom_call.1} parent=74 // loop_footer_branch
                %322 = sbr.rel target = $region77
              $region82: #{tpu_custom_call.1} parent=74 // loop_exit
                _
            $region75: #{tpu_custom_call.1} parent=59 // pred_fallthru
              _
            %p332 = pneg %p318
            // Predicated region
            $region83: #{tpu_custom_call.1} parent=59 // pred_check
              _
            $region84: #{tpu_custom_call.1} parent=59 // pred_check_branch
              %334 = sbr.rel (%p318) target = $region86
            $region85: #{tpu_custom_call.1} parent=59 // pred_region
              %s335 = sand.u32 8, 7
            $region86: #{tpu_custom_call.1} parent=59 // pred_fallthru
              _
          $region60: #{tpu_custom_call.1} parent=51 // pred_fallthru
            _
          // Predicated region
          $region61: #{tpu_custom_call.1} parent=51 // pred_check
            %p302 = pneg %p298
          $region62: #{tpu_custom_call.1} parent=51 // pred_check_branch
            %304 = sbr.rel (%p302) target = $region64
          $region63: #{tpu_custom_call.1} parent=51 // pred_region
            %s305 = sshll.u32 1, 8
            %s306 = ssub.s32 %s305, 1
            loop: start=0, step=1, limit=1
            $region65: #{tpu_custom_call.1} parent=63 // loop_pre_header
              _
            $region66: #{tpu_custom_call.1} parent=63 // loop_header
              %s308 = sphi 0, %s312
              %p309 = scmp.ge.s32.totalorder %s308, 1
              %s313 = sphi %s6, %s6
              %s314 = sphi [#allocation3], [#allocation3]
            $region67: #{tpu_custom_call.1} parent=63 // loop_header_branch
              %311 = sbr.rel (%p309) target = $region71
            $region68: #{tpu_custom_call.1} parent=63 // loop_body
              %v315 = vld [vmem:[%s313] sm:%s306]
              %316 = vst [vmem:[%s314] sm:%s306] %v315
            $region69: #{tpu_custom_call.1} parent=63 // loop_footer
              %s312 = sadd.s32 1, %s308
            $region70: #{tpu_custom_call.1} parent=63 // loop_footer_branch
              %307 = sbr.rel target = $region66
            $region71: #{tpu_custom_call.1} parent=63 // loop_exit
              _
          $region64: #{tpu_custom_call.1} parent=51 // pred_fallthru
            _
          // Predicated region
          $region87: #{tpu_custom_call.1} parent=51 // pred_check
            _
          $region88: #{tpu_custom_call.1} parent=51 // pred_check_branch
            %338 = sbr.rel (0) target = $region90
          $region89: #{tpu_custom_call.1} parent=51 // pred_region
            %339 = vsyncadd %s296, 128
          $region90: #{tpu_custom_call.1} parent=51 // pred_fallthru
            _
          %s340 = smul.u32 4, 16
          %s341 = smul.u32 %s340, 1
          %s342 = sshll.u32 %s341, 4
          %343 = dma.done [#allocation4], %s342
          %s344 = smul.u32 8, 1
          %s345 = sshll.u32 %s344, 4
          %346 = dma.done %s296, %s345
          %v347 = vpack.c.bf16 %v261, %v261
          %v348 = vld [vmem:[#allocation2] sm:$0xf]
          %v349 = vld [vmem:[#allocation2 + $0x4] sm:$0xf]
          %v350 = vld [vmem:[#allocation2 + $0x8] sm:$0xf]
          %v351 = vld [vmem:[#allocation2 + $0xc] sm:$0xf]
          %v352 = vld [vmem:[#allocation2 + $0x10] sm:$0xf]
          %v353 = vld [vmem:[#allocation2 + $0x14] sm:$0xf]
          %v354 = vld [vmem:[#allocation2 + $0x18] sm:$0xf]
          %v355 = vld [vmem:[#allocation2 + $0x1c] sm:$0xf]
          %v356 = vld [vmem:[#allocation2 + $0x20] sm:$0xf]
          %v357 = vld [vmem:[#allocation2 + $0x24] sm:$0xf]
          %v358 = vld [vmem:[#allocation2 + $0x28] sm:$0xf]
          %v359 = vld [vmem:[#allocation2 + $0x2c] sm:$0xf]
          %v360 = vld [vmem:[#allocation2 + $0x30] sm:$0xf]
          %v361 = vld [vmem:[#allocation2 + $0x34] sm:$0xf]
          %v362 = vld [vmem:[#allocation2 + $0x38] sm:$0xf]
          %v363 = vld [vmem:[#allocation2 + $0x3c] sm:$0xf]
          %v364 = vld [vmem:[#allocation3] sm:$0x1]
          %v365 = vlaneseq
          %v366 = vshrl.u32 %v365, 7
          %v367 = vsub.s32 0, %v366
          %v368 = vrot.slane %v364, %v367
          %v385 = vunpack.c.l.b16 %v348
          %v386 = vunpack.c.l.b16 %v349
          %v387 = vunpack.c.l.b16 %v350
          %v388 = vunpack.c.l.b16 %v351
          %v389 = vunpack.c.l.b16 %v352
          %v390 = vunpack.c.l.b16 %v353
          %v391 = vunpack.c.l.b16 %v354
          %v392 = vunpack.c.l.b16 %v355
          %v393 = vunpack.c.l.b16 %v356
          %v394 = vunpack.c.l.b16 %v357
          %v395 = vunpack.c.l.b16 %v358
          %v396 = vunpack.c.l.b16 %v359
          %v397 = vunpack.c.l.b16 %v360
          %v398 = vunpack.c.l.b16 %v361
          %v399 = vunpack.c.l.b16 %v362
          %v400 = vunpack.c.l.b16 %v363
          %v401 = vpack.c.b16 %v386, %v385
          %v402 = vpack.c.b16 %v388, %v387
          %v403 = vpack.c.b16 %v390, %v389
          %v404 = vpack.c.b16 %v392, %v391
          %v405 = vpack.c.b16 %v394, %v393
          %v406 = vpack.c.b16 %v396, %v395
          %v407 = vpack.c.b16 %v398, %v397
          %v408 = vpack.c.b16 %v400, %v399
          %417 = vmatprep.subr.bf16.mxu0 0
          %418 = vmatpush1.bf16.msra.mxu0 %v408
          %419 = vmatprep.subr.bf16.mxu0 0
          %420 = vmatpush1.bf16.msra.mxu0 %v407
          %421 = vmatprep.subr.bf16.mxu0 0
          %422 = vmatpush1.bf16.msra.mxu0 %v406
          %423 = vmatprep.subr.bf16.mxu0 0
          %424 = vmatpush1.bf16.msra.mxu0 %v405
          %425 = vmatprep.subr.bf16.mxu0 0
          %426 = vmatpush1.bf16.msra.mxu0 %v404
          %427 = vmatprep.subr.bf16.mxu0 0
          %428 = vmatpush1.bf16.msra.mxu0 %v403
          %429 = vmatprep.subr.bf16.mxu0 0
          %430 = vmatpush1.bf16.msra.mxu0 %v402
          %431 = vmatprep.subr.bf16.mxu0 0
          %432 = vmatpush1.bf16.msra.mxu0 %v401
          %433 = vmatprep.subr.bf16.mxu0 0
          %434 = vmatpush2.bf16.msra.mxu0 0
          %435 = vmatprep.subr.bf16.mxu0 0
          %436 = vmatpush2.bf16.msra.mxu0 0
          %437 = vmatprep.subr.bf16.mxu0 0
          %438 = vmatpush2.bf16.msra.mxu0 0
          %439 = vmatprep.subr.bf16.mxu0 0
          %440 = vmatpush2.bf16.msra.mxu0 0
          %441 = vmatprep.subr.bf16.mxu0 0
          %442 = vmatpush2.bf16.msra.mxu0 0
          %443 = vmatprep.subr.bf16.mxu0 0
          %444 = vmatpush2.bf16.msra.mxu0 0
          %445 = vmatprep.subr.bf16.mxu0 0
          %446 = vmatpush2.bf16.msra.mxu0 0
          %447 = vmatprep.subr.bf16.mxu0 0
          %448 = vmatpush2.bf16.msra.mxu0 0
          %449 = vmatprep.mubr.bf16.mxu0 0
          %450 = vmatmul.mubr.bf16.gmra.mxu0 %v347
          %v451 = vpop.f32.mrf.mxu0
          %v452 = vadd.f32 %v368, %v451
          %v453 = vpop.f32.mrf.mxu0
          %v454 = vpop.f32.mrf.mxu0
          %v455 = vpop.f32.mrf.mxu0
          %456 = vdwg.mxu0
          %457 = vst [vmem:[%s249] sm:$0xff] %v452
        $region52: #{tpu_custom_call.1} parent=27 // pred_fallthru
          _
        %p458 = scmp.eq.s32.totalorder %s260, 4
        // Predicated region
        $region91: #{tpu_custom_call.1} parent=27 // pred_check
          %p459 = pneg %p458
        $region92: #{tpu_custom_call.1} parent=27 // pred_check_branch
          %461 = sbr.rel (%p459) target = $region94
        $region93: #{tpu_custom_call.1} parent=27 // pred_region
          %v462 = vxor.u32 %v261, 2147483648
          %v463 = vmul.f32 %v462, 1.442695
          %v464 = vpow.pop %v463
          %v465 = vadd.f32 %v464, 1.0
          %v466 = vrcp.pop %v465
          %v467 = vmul.f32 1.0, %v466
          %468 = vst [vmem:[%s249] sm:$0xff] %v467
        $region94: #{tpu_custom_call.1} parent=27 // pred_fallthru
          _
        %p469 = scmp.eq.s32.totalorder %s260, 5
        // Predicated region
        $region95: #{tpu_custom_call.1} parent=27 // pred_check
          %p470 = pneg %p469
        $region96: #{tpu_custom_call.1} parent=27 // pred_check_branch
          %472 = sbr.rel (%p470) target = $region98
        $region97: #{tpu_custom_call.1} parent=27 // pred_region
          %v473 = vtanh.pop %v261
          %474 = vst [vmem:[%s249] sm:$0xff] %v473
        $region98: #{tpu_custom_call.1} parent=27 // pred_fallthru
          _
        %p475 = scmp.eq.s32.totalorder %s260, 6
        // Predicated region
        $region99: #{tpu_custom_call.1} parent=27 // pred_check
          %p476 = pneg %p475
        $region100: #{tpu_custom_call.1} parent=27 // pred_check_branch
          %478 = sbr.rel (%p476) target = $region102
        $region101: #{tpu_custom_call.1} parent=27 // pred_region
          %479 = vst [vmem:[%s249] sm:$0xff] %v261
        $region102: #{tpu_custom_call.1} parent=27 // pred_fallthru
          _
        %p480 = scmp.eq.s32.totalorder %s260, 7
        // Predicated region
        $region103: #{tpu_custom_call.1} parent=27 // pred_check
          %p481 = pneg %p480
        $region104: #{tpu_custom_call.1} parent=27 // pred_check_branch
          %483 = sbr.rel (%p481) target = $region106
        $region105: #{tpu_custom_call.1} parent=27 // pred_region
          %v484 = vsub.f32 0.0, %v261
          %485 = vst [vmem:[%s249] sm:$0xff] %v484
        $region106: #{tpu_custom_call.1} parent=27 // pred_fallthru
          _
        %s486 = sand.u32 %s108, 1
        %s487 = scalar_lea.sflag [#allocation11], %s486
        %s488 = sand.u32 %s108, 1
        %s489 = smul.addr %s488, 8
        %s490 = scalar_lea.vmem [#allocation14], %s489
        %s491 = sand.u32 %s134, 1
        %s492 = scalar_lea.sflag [#allocation16], %s491
        %s493 = sand.u32 %s134, 1
        %s494 = smul.addr %s493, 8
        %s495 = scalar_lea.vmem [#allocation15], %s494
        // Predicated region
        $region107: #{tpu_custom_call.1} parent=27 // pred_check
          %p496 = pneg %p118
        $region108: #{tpu_custom_call.1} parent=27 // pred_check_branch
          %498 = sbr.rel (%p496) target = $region110
        $region109: #{tpu_custom_call.1} parent=27 // pred_region
          %s500 = ssub.s32 128, 128
          %501 = vsyncadd %s487, %s500
          %s502 = smul.addr %s44, 128
          %s503 = scalar_lea.hbm %s7, %s502
          %s505 = sshll.u32 %s490, 4
          %s506 = int_to_ptr.vmem [resolvable:$true] %s505
          %508 = dma.vmem_to_hbm [thread:$0]  %s506, 128, %s503, %s487
        $region110: #{tpu_custom_call.1} parent=27 // pred_fallthru
          _
        // Predicated region
        $region111: #{tpu_custom_call.1} parent=27 // pred_check
          %p509 = pneg %p144
        $region112: #{tpu_custom_call.1} parent=27 // pred_check_branch
          %511 = sbr.rel (%p509) target = $region114
        $region113: #{tpu_custom_call.1} parent=27 // pred_region
          %s513 = ssub.s32 128, 128
          %514 = vsyncadd %s492, %s513
          %s515 = smul.addr %s44, 128
          %s516 = scalar_lea.hbm %s8, %s515
          %s518 = sshll.u32 %s495, 4
          %s519 = int_to_ptr.vmem [resolvable:$true] %s518
          %521 = dma.vmem_to_hbm [thread:$0]  %s519, 128, %s516, %s492
        $region114: #{tpu_custom_call.1} parent=27 // pred_fallthru
          _
      $region28: #{tpu_custom_call.1} parent=5 // pred_fallthru
        _
      %p522 = scmp.le.s32.totalorder 2, %s39
      // Predicated region
      $region115: #{tpu_custom_call.1} parent=5 // pred_check
        %p523 = pneg %p522
      $region116: #{tpu_custom_call.1} parent=5 // pred_check_branch
        %525 = sbr.rel (%p523) target = $region118
      $region117: #{tpu_custom_call.1} parent=5 // pred_region
        %s526 = ssub.s32 %s39, 2
        // Predicated region
        $region119: #{tpu_custom_call.1} parent=117 // pred_check
          %p527 = pneg %p124
        $region120: #{tpu_custom_call.1} parent=117 // pred_check_branch
          %529 = sbr.rel (%p527) target = $region122
        $region121: #{tpu_custom_call.1} parent=117 // pred_region
          %s530 = sand.u32 %s109, 1
          %s531 = scalar_lea.sflag [#allocation11], %s530
          %s532 = sand.u32 %s109, 1
          %s533 = smul.addr %s532, 8
          %s534 = scalar_lea.vmem [#allocation14], %s533
          %535 = dma.done %s531, 128
        $region122: #{tpu_custom_call.1} parent=117 // pred_fallthru
          _
        // Predicated region
        $region123: #{tpu_custom_call.1} parent=117 // pred_check
          %p536 = pneg %p150
        $region124: #{tpu_custom_call.1} parent=117 // pred_check_branch
          %538 = sbr.rel (%p536) target = $region126
        $region125: #{tpu_custom_call.1} parent=117 // pred_region
          %s539 = sand.u32 %s135, 1
          %s540 = scalar_lea.sflag [#allocation16], %s539
          %s541 = sand.u32 %s135, 1
          %s542 = smul.addr %s541, 8
          %s543 = scalar_lea.vmem [#allocation15], %s542
          %544 = dma.done %s540, 128
        $region126: #{tpu_custom_call.1} parent=117 // pred_fallthru
          _
      $region118: #{tpu_custom_call.1} parent=5 // pred_fallthru
        _
    $region6: #{tpu_custom_call.1} parent=1 // loop_footer
      %s43 = sadd.s32 1, %s39
    $region7: #{tpu_custom_call.1} parent=1 // loop_footer_branch
      %38 = sbr.rel target = $region3
    $region8: #{tpu_custom_call.1} parent=1 // loop_exit
      _
    %545 = vsyncpa [#allocation10], 1
    %s546 = scalar_lea.sflag [#allocation10], 1
    %547 = vsyncpa %s546, 1
    %548 = vsyncpa [#allocation13], 1
    %s549 = scalar_lea.sflag [#allocation13], 1
    %550 = vsyncpa %s549, 1
    %551 = vsyncpa [#allocation11], 1
    %s552 = scalar_lea.sflag [#allocation11], 1
    %553 = vsyncpa %s552, 1
    %554 = vsyncpa [#allocation16], 1
    %s555 = scalar_lea.sflag [#allocation16], 1
    %556 = vsyncpa %s555, 1
  %557 = vsyncmov [#allocation4]
  %s558 = vpop.sfrf %557
  %p559 = scmp.eq.s32.totalorder %s558, 0
  %p560 = pneg %p559
  %562 = shalt.err (%p560)
  %s563 = scalar_lea.sflag [#allocation4], 1
  %564 = vsyncmov %s563
  %s565 = vpop.sfrf %564
  %p566 = scmp.eq.s32.totalorder %s565, 0
  %p567 = pneg %p566
  %569 = shalt.err (%p567)

</llo_original>
